<compile_context>
chip_gen: v5e
topology: v5e:2x2
jax: 0.10.0
libtpu: 0.0.40
codegen_flags: <defaults>
</compile_context>

<pallas_src>
import math

import jax
import jax.numpy as jnp
from jax.experimental import pallas as pl
from jax.experimental.pallas import tpu as pltpu


# ---------------------------------------------------------------------------
# Helpers
# ---------------------------------------------------------------------------
def _round_up(x: int, m: int) -> int:
    return (x + m - 1) // m * m


def _pad_last(a, target):
    """Zero-pad the last dimension of `a` up to `target`."""
    pad = target - a.shape[-1]
    if pad == 0:
        return a
    widths = [(0, 0)] * (a.ndim - 1) + [(0, pad)]
    return jnp.pad(a, widths)


def _vmem_limit_bytes() -> int:
    """Chip-aware scoped-VMEM request: ~half of physical capacity, capped at
    64 MiB (v5e/v6e have 128 MiB, v7x only 64 MiB per TensorCore).  Falls back
    to a safe 32 MiB when the query is unavailable (e.g. interpret mode)."""
    try:
        if hasattr(pltpu, "get_tpu_info"):
            cap = getattr(pltpu.get_tpu_info(), "vmem_capacity_bytes", None)
            if cap:
                return int(min(max(cap // 2, 32 * 1024 * 1024),
                               64 * 1024 * 1024))
    except Exception:
        pass
    return 32 * 1024 * 1024


def _pick_out_tile(in_features: int, out_pad: int, vmem_limit: int) -> int:
    """Largest lane-dense (multiple-of-128) divisor of the padded Out that fits
    a VMEM budget which accounts for In.  Per output lane the sampled path
    streams ~2 double-buffered f32 weight tiles + a double-buffered bf16 eps
    tile + in-kernel temporaries  ~= 26 * In  bytes.  Prefers >= 2 out-tiles so
    both v7x TensorCores get work."""
    budget = int(vmem_limit * 0.4)
    per_lane = max(in_features, 1) * 26
    t_max = max(128, (budget // per_lane) // 128 * 128)
    limit = min(t_max, 512, out_pad)
    candidates = [t for t in range(128, limit + 1, 128) if out_pad % t == 0]
    if not candidates:
        # TODO(synk): for very large In even a 128-wide tile may bust VMEM;
        # that regime needs a K (In) grid axis with an f32 accumulator scratch.
        return 128
    t = max(candidates)
    if t == out_pad and out_pad >= 256:
        halves = [c for c in candidates if c <= out_pad // 2]
        if halves:
            t = max(halves)
    return t


# ---------------------------------------------------------------------------
# Sampled path.  Grid = (out_tiles, samples); out-tile outer, sample inner so
# the mu/sigma tiles stay resident in VMEM across samples.
#   W_s = mu + sigma * eps_w          (f32 reparameterization)
#   y_s = x @ W_s + (b_mu + b_sig*eps_b)   (bf16 MXU matmul, f32 accumulation)
# ---------------------------------------------------------------------------
def _sample_kernel(x_ref, wmu_ref, wsig_ref, epsw_ref,
                   bmu_ref, bsig_ref, epsb_ref, out_ref):
    w = wmu_ref[...] + wsig_ref[...] * epsw_ref[...].astype(jnp.float32)
    b = bmu_ref[...] + bsig_ref[...] * epsb_ref[...]
    y = jnp.dot(x_ref[...], w.astype(jnp.bfloat16),
                preferred_element_type=jnp.float32)
    out_ref[...] = (y + b).astype(out_ref.dtype)


def _bayes_linear_sample(x, weight_mu, weight_sigma, bias_mu, bias_sigma,
                         eps_w, eps_b):
    """x: (B, In); weight_*: (Out, In); bias_*: (Out,);
    eps_w: (N, In, Out) bf16; eps_b: (N, Out) f32.  Returns (N, B, Out)."""
    B, In = x.shape
    Out = weight_mu.shape[0]
    N = eps_w.shape[0]
    out_dtype = x.dtype

    out_pad = _round_up(Out, 128)
    vmem_limit = _vmem_limit_bytes()
    t_out = _pick_out_tile(In, out_pad, vmem_limit)
    nj = out_pad // t_out

    # (In, Out) layout once in XLA -> no per-sample transpose in the kernel;
    # pad Out with mu=0 / sigma=0 so padded columns are exactly zero.
    wmu_t = _pad_last(weight_mu.T, out_pad)
    wsig_t = _pad_last(weight_sigma.T, out_pad)
    bmu2 = _pad_last(bias_mu.reshape(1, Out), out_pad)
    bsig2 = _pad_last(bias_sigma.reshape(1, Out), out_pad)
    epsw = _pad_last(eps_w, out_pad)                       # (N, In, Out_pad) bf16
    epsb = _pad_last(eps_b.reshape(N, 1, Out), out_pad)    # (N, 1, Out_pad)  f32
    xb = x.astype(jnp.bfloat16)                            # pre-cast once

    grid_spec = pltpu.PrefetchScalarGridSpec(
        num_scalar_prefetch=0,
        grid=(nj, N),                                      # j outer, s inner
        in_specs=[
            pl.BlockSpec((B, In), lambda j, s: (0, 0)),        # x (resident)
            pl.BlockSpec((In, t_out), lambda j, s: (0, j)),    # mu^T   (resident over s)
            pl.BlockSpec((In, t_out), lambda j, s: (0, j)),    # sigma^T(resident over s)
            pl.BlockSpec((None, In, t_out), lambda j, s: (s, 0, j)),  # eps_w
            pl.BlockSpec((1, t_out), lambda j, s: (0, j)),     # bias_mu
            pl.BlockSpec((1, t_out), lambda j, s: (0, j)),     # bias_sigma
            pl.BlockSpec((None, 1, t_out), lambda j, s: (s, 0, j)),   # eps_b
        ],
        out_specs=pl.BlockSpec((None, B, t_out), lambda j, s: (s, 0, j)),
    )
    out = pl.pallas_call(
        _sample_kernel,
        out_shape=jax.ShapeDtypeStruct((N, B, out_pad), out_dtype),
        grid_spec=grid_spec,
        compiler_params=pltpu.CompilerParams(
            dimension_semantics=("parallel", "arbitrary"),
            vmem_limit_bytes=vmem_limit),
    )(xb, wmu_t, wsig_t, epsw, bmu2, bsig2, epsb)
    if out_pad != Out:
        out = out[..., :Out]
    return out


# ---------------------------------------------------------------------------
# MAP path (num_samples == 0): plain  y = x @ mu^T + bias_mu  — no eps stream,
# no exp, no reparameterization work; mu^T pre-cast to bf16 in the wrapper.
# ---------------------------------------------------------------------------
def _map_kernel(x_ref, wmu_ref, bmu_ref, out_ref):
    y = jnp.dot(x_ref[...], wmu_ref[...], preferred_element_type=jnp.float32)
    out_ref[...] = (y + bmu_ref[...]).astype(out_ref.dtype)


def _bayes_linear_map(x, weight_mu, bias_mu):
    B, In = x.shape
    Out = weight_mu.shape[0]
    out_dtype = x.dtype

    out_pad = _round_up(Out, 128)
    vmem_limit = _vmem_limit_bytes()
    t_out = _pick_out_tile(In, out_pad, vmem_limit)
    nj = out_pad // t_out

    wmu_t = _pad_last(weight_mu.T.astype(jnp.bfloat16), out_pad)
    bmu2 = _pad_last(bias_mu.reshape(1, Out), out_pad)
    xb = x.astype(jnp.bfloat16)

    grid_spec = pltpu.PrefetchScalarGridSpec(
        num_scalar_prefetch=0,
        grid=(nj,),
        in_specs=[
            pl.BlockSpec((B, In), lambda j: (0, 0)),
            pl.BlockSpec((In, t_out), lambda j: (0, j)),
            pl.BlockSpec((1, t_out), lambda j: (0, j)),
        ],
        out_specs=pl.BlockSpec((B, t_out), lambda j: (0, j)),
    )
    out = pl.pallas_call(
        _map_kernel,
        out_shape=jax.ShapeDtypeStruct((B, out_pad), out_dtype),
        grid_spec=grid_spec,
        compiler_params=pltpu.CompilerParams(
            dimension_semantics=("parallel",),
            vmem_limit_bytes=vmem_limit),
    )(xb, wmu_t, bmu2)
    if out_pad != Out:
        out = out[:, :Out]
    return out


# ---------------------------------------------------------------------------
# Module-equivalent wrapper (parameter init + forward dispatch).
# ---------------------------------------------------------------------------
def truncated_normal(key, shape, mean=0.0, std=1.0, a=-2.0, b=2.0,
                     dtype=jnp.float32):
    """Matches the torch helper: normal sample then clamp to [a, b]."""
    x = mean + std * jax.random.normal(key, shape, dtype=dtype)
    return jnp.clip(x, a, b)


class BayesianLinear:
    # TODO(synk): kl_loss() (closed-form Normal/Normal KL over parameters) is a
    # tiny parameter-space reduction, left to plain JAX and not ported here.

    def __init__(self, in_features, out_features, prior_std=1.0, *, key=None):
        if key is None:
            key = jax.random.PRNGKey(0)
        self.in_features = in_features
        self.out_features = out_features
        self.prior_std = prior_std

        k_wmu, k_wlv = jax.random.split(key, 2)
        self.weight_mu = truncated_normal(
            k_wmu, (out_features, in_features),
            mean=0.0, std=prior_std, a=-2 * prior_std, b=2 * prior_std)
        self.bias_mu = jnp.zeros((out_features,), jnp.float32)

        log_var_mean_prior = math.log(prior_std ** 2)
        log_var_std_prior = prior_std / 10
        self.weight_logvar = truncated_normal(
            k_wlv, (out_features, in_features),
            mean=log_var_mean_prior, std=log_var_std_prior,
            a=log_var_mean_prior - 2.0 * log_var_std_prior,
            b=log_var_mean_prior + 2.0 * log_var_std_prior)
        self.bias_logvar = jnp.full((out_features,), log_var_mean_prior,
                                    jnp.float32)

    def _draw_eps(self, key, num_samples):
        """Standard-normal noise, drawn in XLA (the kernel consumes it as a
        tiled input).  eps_w is streamed in bf16 to halve the HBM traffic."""
        kw, kb = jax.random.split(key)
        eps_w = jax.random.normal(
            kw, (num_samples, self.in_features, self.out_features),
            jnp.float32).astype(jnp.bfloat16)
        eps_b = jax.random.normal(
            kb, (num_samples, self.out_features), jnp.float32)
        return eps_w, eps_b

    def forward(self, x, num_samples, key=None):
        """x: [B, in_features].  `key` drives the weight-sample noise; pass a
        fresh key per call for fresh noise.
        Returns [B, out] for num_samples <= 1, [N, B, out] otherwise."""
        if num_samples == 0:
            return _bayes_linear_map(x, self.weight_mu, self.bias_mu)

        if key is None:
            key = jax.random.PRNGKey(0)
        # Sample-invariant sigmas hoisted out of the per-sample grid loop.
        weight_sigma = jnp.exp(0.5 * self.weight_logvar)
        bias_sigma = jnp.exp(0.5 * self.bias_logvar)
        eps_w, eps_b = self._draw_eps(key, num_samples)
        out = _bayes_linear_sample(x, self.weight_mu, weight_sigma,
                                   self.bias_mu, bias_sigma, eps_w, eps_b)
        if num_samples == 1:
            return out[0]
        return out


# ---------------------------------------------------------------------------
# Self-test
# ---------------------------------------------------------------------------
if __name__ == "__main__":
    key = jax.random.PRNGKey(0)
    k_init, k_x, k_eps = jax.random.split(key, 3)

    # Out=192 is deliberately NOT a multiple of 128 to exercise the padding path.
    B, In, Out, N = 8, 256, 192, 3
    layer = BayesianLinear(In, Out, prior_std=1.0, key=k_init)
    x = jax.random.normal(k_x, (B, In), jnp.float32)

    out_multi = jax.block_until_ready(layer.forward(x, num_samples=N, key=k_eps))
    assert out_multi.shape == (N, B, Out)

    out_one = jax.block_until_ready(layer.forward(x, num_samples=1, key=k_eps))
    assert out_one.shape == (B, Out)

    out_map = jax.block_until_ready(layer.forward(x, num_samples=0))
    assert out_map.shape == (B, Out)

    # --- validation (pure-JAX references using the exact same eps) ----------
    x_b = x.astype(jnp.bfloat16).astype(jnp.float32)

    # (a) MAP path against the analytic linear layer (bf16-rounded operands).
    wmu_b = layer.weight_mu.astype(jnp.bfloat16).astype(jnp.float32)
    ref_map = x_b @ wmu_b.T + layer.bias_mu
    assert jnp.allclose(out_map, ref_map, rtol=5e-3, atol=5e-3)

    weight_sigma = jnp.exp(0.5 * layer.weight_logvar)
    bias_sigma = jnp.exp(0.5 * layer.bias_logvar)

    # (b) N-sample path.
    eps_w, eps_b = layer._draw_eps(k_eps, N)
    Ws = layer.weight_mu.T[None] + weight_sigma.T[None] * eps_w.astype(jnp.float32)
    Ws_b = Ws.astype(jnp.bfloat16).astype(jnp.float32)      # what the MXU sees
    bs = layer.bias_mu[None] + bias_sigma[None] * eps_b
    ref_multi = jnp.einsum("bi,nio->nbo", x_b, Ws_b) + bs[:, None, :]
    assert jnp.allclose(out_multi, ref_multi, rtol=5e-3, atol=5e-3)

    # (c) num_samples == 1 path (its own one-sample eps draw).
    eps_w1, eps_b1 = layer._draw_eps(k_eps, 1)
    W1 = layer.weight_mu.T + weight_sigma.T * eps_w1[0].astype(jnp.float32)
    W1_b = W1.astype(jnp.bfloat16).astype(jnp.float32)
    b1 = layer.bias_mu + bias_sigma * eps_b1[0]
    ref_one = x_b @ W1_b + b1
    assert jnp.allclose(out_one, ref_one, rtol=5e-3, atol=5e-3)

    print("KERNEL_OK")
</pallas_src>

<mosaic_0001>
module attributes {stable_mosaic.version = 11 : i64} {
  func.func @_sample_kernel(%arg0: i32, %arg1: i32, %arg2: memref<8x256xbf16, #tpu.memory_space<vmem>>, %arg3: memref<256x128xf32, #tpu.memory_space<vmem>>, %arg4: memref<256x128xf32, #tpu.memory_space<vmem>>, %arg5: memref<1x256x128xbf16, #tpu.memory_space<vmem>>, %arg6: memref<1x128xf32, #tpu.memory_space<vmem>>, %arg7: memref<1x128xf32, #tpu.memory_space<vmem>>, %arg8: memref<1x1x128xf32, #tpu.memory_space<vmem>>, %arg9: memref<1x8x128xf32, #tpu.memory_space<vmem>>) attributes {dimension_semantics = [#tpu.dimension_semantics<parallel>, #tpu.dimension_semantics<arbitrary>], iteration_bounds = array<i64: 2, 3>, scalar_prefetch = 0 : i64, scratch_operands = 0 : i64, tpu.core_type = #tpu.core_type<tc>, window_params = [{pipeline_mode = #tpu.pipeline_mode<synchronous>, transform_indices = @transform_0, window_bounds = array<i64: 8, 256>}, {transform_indices = @transform_1, window_bounds = array<i64: 256, 128>}, {transform_indices = @transform_2, window_bounds = array<i64: 256, 128>}, {transform_indices = @transform_3, window_bounds = array<i64: 1, 256, 128>}, {transform_indices = @transform_4, window_bounds = array<i64: 1, 128>}, {transform_indices = @transform_5, window_bounds = array<i64: 1, 128>}, {transform_indices = @transform_6, window_bounds = array<i64: 1, 1, 128>}, {transform_indices = @transform_7, window_bounds = array<i64: 1, 8, 128>}]} {
    %c0 = arith.constant 0 : index
    %c0_0 = arith.constant 0 : index
    %0 = vector.load %arg3[%c0, %c0_0] : memref<256x128xf32, #tpu.memory_space<vmem>>, vector<256x128xf32>
    %c0_1 = arith.constant 0 : index
    %c0_2 = arith.constant 0 : index
    %1 = vector.load %arg4[%c0_1, %c0_2] : memref<256x128xf32, #tpu.memory_space<vmem>>, vector<256x128xf32>
    %c0_3 = arith.constant 0 : index
    %c0_4 = arith.constant 0 : index
    %c0_5 = arith.constant 0 : index
    %2 = vector.load %arg5[%c0_3, %c0_4, %c0_5] : memref<1x256x128xbf16, #tpu.memory_space<vmem>>, vector<1x256x128xbf16>
    %3 = vector.shape_cast %2 : vector<1x256x128xbf16> to vector<256x128xbf16>
    %4 = arith.extf %3 : vector<256x128xbf16> to vector<256x128xf32>
    %5 = arith.mulf %1, %4 : vector<256x128xf32>
    %6 = arith.addf %0, %5 : vector<256x128xf32>
    %c0_6 = arith.constant 0 : index
    %c0_7 = arith.constant 0 : index
    %7 = vector.load %arg6[%c0_6, %c0_7] : memref<1x128xf32, #tpu.memory_space<vmem>>, vector<1x128xf32>
    %c0_8 = arith.constant 0 : index
    %c0_9 = arith.constant 0 : index
    %8 = vector.load %arg7[%c0_8, %c0_9] : memref<1x128xf32, #tpu.memory_space<vmem>>, vector<1x128xf32>
    %c0_10 = arith.constant 0 : index
    %c0_11 = arith.constant 0 : index
    %c0_12 = arith.constant 0 : index
    %9 = vector.load %arg8[%c0_10, %c0_11, %c0_12] : memref<1x1x128xf32, #tpu.memory_space<vmem>>, vector<1x1x128xf32>
    %10 = vector.shape_cast %9 : vector<1x1x128xf32> to vector<1x128xf32>
    %11 = arith.mulf %8, %10 : vector<1x128xf32>
    %12 = arith.addf %7, %11 : vector<1x128xf32>
    %c0_13 = arith.constant 0 : index
    %c0_14 = arith.constant 0 : index
    %13 = vector.load %arg2[%c0_13, %c0_14] : memref<8x256xbf16, #tpu.memory_space<vmem>>, vector<8x256xbf16>
    %14 = arith.truncf %6 : vector<256x128xf32> to vector<256x128xbf16>
    %cst = arith.constant dense<0.000000e+00> : vector<8x128xf32>
    %15 = tpu.matmul %13, %14, %cst {dimension_numbers = #tpu.dot_dimension_numbers<[1], [0], [0], [1], [0, 0, 1, 1], [], []>} : vector<8x256xbf16>, vector<256x128xbf16>, vector<8x128xf32> -> vector<8x128xf32>
    %16 = vector.broadcast %12 : vector<1x128xf32> to vector<8x128xf32>
    %17 = arith.addf %15, %16 : vector<8x128xf32>
    %c0_15 = arith.constant 0 : index
    %c0_16 = arith.constant 0 : index
    %c0_17 = arith.constant 0 : index
    %18 = vector.load %arg9[%c0_15, %c0_16, %c0_17] : memref<1x8x128xf32, #tpu.memory_space<vmem>>, vector<1x8x128xf32>
    %19 = vector.shape_cast %18 : vector<1x8x128xf32> to vector<8x128xf32>
    %20 = vector.shape_cast %17 : vector<8x128xf32> to vector<1x8x128xf32>
    tpu.vector_store %arg9[%c0_15, %c0_16, %c0_17], %20 {strides = array<i32>} : memref<1x8x128xf32, #tpu.memory_space<vmem>>, vector<1x8x128xf32>,
    return
  }
  func.func @transform_0(%arg0: i32, %arg1: i32) -> (i32, i32) {
    %c0_i32 = arith.constant 0 : i32
    %c0_i32_0 = arith.constant 0 : i32
    %c0_i32_1 = arith.constant 0 : i32
    return %c0_i32, %c0_i32_0 : i32, i32
  }
  func.func @transform_1(%arg0: i32, %arg1: i32) -> (i32, i32) {
    %c0_i32 = arith.constant 0 : i32
    %c0_i32_0 = arith.constant 0 : i32
    return %c0_i32, %arg0 : i32, i32
  }
  func.func @transform_2(%arg0: i32, %arg1: i32) -> (i32, i32) {
    %c0_i32 = arith.constant 0 : i32
    %c0_i32_0 = arith.constant 0 : i32
    return %c0_i32, %arg0 : i32, i32
  }
  func.func @transform_3(%arg0: i32, %arg1: i32) -> (i32, i32, i32) {
    %c0_i32 = arith.constant 0 : i32
    %c0_i32_0 = arith.constant 0 : i32
    return %arg1, %c0_i32, %arg0 : i32, i32, i32
  }
  func.func @transform_4(%arg0: i32, %arg1: i32) -> (i32, i32) {
    %c0_i32 = arith.constant 0 : i32
    %c0_i32_0 = arith.constant 0 : i32
    return %c0_i32, %arg0 : i32, i32
  }
  func.func @transform_5(%arg0: i32, %arg1: i32) -> (i32, i32) {
    %c0_i32 = arith.constant 0 : i32
    %c0_i32_0 = arith.constant 0 : i32
    return %c0_i32, %arg0 : i32, i32
  }
  func.func @transform_6(%arg0: i32, %arg1: i32) -> (i32, i32, i32) {
    %c0_i32 = arith.constant 0 : i32
    %c0_i32_0 = arith.constant 0 : i32
    return %arg1, %c0_i32, %arg0 : i32, i32, i32
  }
  func.func @transform_7(%arg0: i32, %arg1: i32) -> (i32, i32, i32) {
    %c0_i32 = arith.constant 0 : i32
    %c0_i32_0 = arith.constant 0 : i32
    return %arg1, %c0_i32, %arg0 : i32, i32, i32
  }
}

</mosaic_0001>

<llo_original>
// kernel: tpu_custom_call.1
$region0: #{tpu_custom_call.1}
  #allocation0 [shape = 'u32[]', space=smem, size = 0x4, offset = 0x4, fixed_abs, tag = 'smem constant byte address 0x4 - core index']
  #allocation1 [shape = 'u32[72,128]{1,0:T(1,128)}', space=vmem, size = 0x9000, scoped, tag = 'internal scratch']
  %s0 = inlined_call_operand.hbm [shape: bf16[8,256], index: 0, kind: input, shape index: {}]
  %s1 = inlined_call_operand.hbm [shape: f32[256,256], index: 1, kind: input, shape index: {}]
  %s2 = inlined_call_operand.hbm [shape: f32[256,256], index: 2, kind: input, shape index: {}]
  %s3 = inlined_call_operand.hbm [shape: bf16[3,256,256], index: 3, kind: input, shape index: {}]
  %s4 = inlined_call_operand.vmem [shape: f32[1,256], index: 4, kind: input, shape index: {}]
  %s5 = inlined_call_operand.vmem [shape: f32[1,256], index: 5, kind: input, shape index: {}]
  %s6 = inlined_call_operand.hbm [shape: f32[3,1,256], index: 6, kind: input, shape index: {}]
  %s7 = inlined_call_operand.hbm [shape: f32[3,8,256], index: 7, kind: output, shape index: {}]
  %s8 = sld [smem:[#allocation0]]
  $region81: #{tpu_custom_call.1} parent=0
    _
  %s10 = ssub.s32 1, %s8
  %s11 = scalar_select 0, %s10, %s8
  $region1: #{tpu_custom_call.1} parent=0
    #allocation2 [shape = 'u8[4096]{0}', space=vmem, size = 0x1000, scoped, tag = 'input window, operand 0, single buffered']
    #allocation3 [shape = 's32[2]{0}', space=sflag, size = 0x8, scoped, tag = 'scoped memory for tpu_custom_call.1']
    #allocation4 [shape = 's32[2]{0}', space=sflag, size = 0x8, scoped, tag = 'scoped memory for tpu_custom_call.1']
    #allocation5 [shape = 'u8[262144]{0}', space=vmem, size = 0x40000, scoped, tag = 'input window, operand 1']
    #allocation6 [shape = 's32[2]{0}', space=sflag, size = 0x8, scoped, tag = 'scoped memory for tpu_custom_call.1']
    #allocation7 [shape = 'u8[262144]{0}', space=vmem, size = 0x40000, scoped, tag = 'input window, operand 2']
    #allocation8 [shape = 'u8[131072]{0}', space=vmem, size = 0x20000, scoped, tag = 'input window, operand 3']
    #allocation9 [shape = 's32[2]{0}', space=sflag, size = 0x8, scoped, tag = 'scoped memory for tpu_custom_call.1']
    #allocation10 [shape = 'u8[1024]{0}', space=vmem, size = 0x400, scoped, tag = 'input window, operand 6']
    #allocation11 [shape = 'u8[8192]{0}', space=vmem, size = 0x2000, scoped, tag = 'output window, operand 0']
    %12 = vsyncpa [#allocation3], 0
    %13 = vsyncpa [#allocation6], 0
    %s14 = scalar_lea.sflag [#allocation6], 1
    %15 = vsyncpa %s14, 0
    %16 = vsyncpa [#allocation9], 0
    %s17 = scalar_lea.sflag [#allocation9], 1
    %18 = vsyncpa %s17, 0
    %19 = vsyncpa [#allocation4], 0
    %s20 = scalar_lea.sflag [#allocation4], 1
    %21 = vsyncpa %s20, 0
    loop: start=0, step=1, limit=8
    $region2: #{tpu_custom_call.1} parent=1 // loop_pre_header
      _
    $region3: #{tpu_custom_call.1} parent=1 // loop_header
      %s23 = sphi 0, %s27
      %p24 = scmp.ge.s32.totalorder %s23, 8
      %s30 = sphi 0, %s42
      %s31 = sphi 0, %s38
      %s32 = sphi 0, %s30
      %s33 = sphi 0, %s31
      %s34 = sphi 0, %s32
      %s35 = sphi 0, %s33
      %s43 = sphi 0, %s43
      %s45 = sphi 0, %s43
      %s46 = sphi 0, %s45
      %s60 = sphi 0, %s46
      %s66 = sphi 0, %s68
      %s69 = sphi 0, %s66
      %s70 = sphi 0, %s69
      %s86 = sphi 0, %s70
      %s92 = sphi 0, %s94
      %s95 = sphi 0, %s92
      %s96 = sphi 0, %s95
      %s112 = sphi 0, %s96
      %s120 = sphi 0, %s122
      %s123 = sphi 0, %s120
      %s124 = sphi 0, %s123
      %s140 = sphi 0, %s124
      %s146 = sphi 0, %s148
      %s149 = sphi 0, %s146
      %s150 = sphi 0, %s149
      %s166 = sphi 0, %s150
      %s172 = sphi 0, %s174
      %s175 = sphi 0, %s172
      %s176 = sphi 0, %s175
      %s192 = sphi 0, %s176
      %s200 = sphi 0, %s202
      %s203 = sphi 0, %s200
      %s204 = sphi 0, %s203
      %s220 = sphi 0, %s204
      %s228 = sphi 0, %s230
      %s231 = sphi 0, %s228
      %s232 = sphi 0, %s231
      %s248 = sphi 0, %s232
    $region4: #{tpu_custom_call.1} parent=1 // loop_header_branch
      %26 = sbr.rel (%p24) target = $region8
    $region5: #{tpu_custom_call.1} parent=1 // loop_body
      %s28 = ssub.s32 %s23, 1
      %s29 = ssub.s32 %s23, 2
      %s36 = sadd.s32 1, %s31
      %p37 = scmp.ge.s32.totalorder %s36, 3
      %s38 = scalar_select %p37, 0, %s36
      %s39 = sadd.s32 1, %s30
      %s40 = scalar_select %p37, %s39, %s30
      %p41 = scmp.ge.s32.totalorder %s40, 2
      %s42 = scalar_select %p41, 0, %s40
      %s44 = sadd.s32 %s43, 1
      %p47 = scmp.eq.s32.totalorder %s23, 5
      %p48 = scmp.ne.s32.totalorder %s43, %s45
      %p49 = scmp.eq.s32.totalorder %s23, 0
      %p50 = por %p48, %p49
      %p51 = scmp.ne.s32.totalorder %s43, %s45
      %p52 = scmp.eq.s32.totalorder %s28, 5
      %p53 = por %p51, %p52
      %p54 = scmp.ne.s32.totalorder %s45, %s46
      %p55 = scmp.eq.s32.totalorder %s28, 0
      %p56 = por %p54, %p55
      %p57 = scmp.ne.s32.totalorder %s45, %s46
      %p58 = scmp.eq.s32.totalorder %s29, 5
      %p59 = por %p57, %p58
      %p61 = scmp.ne.s32.totalorder %s46, %s60
      %p62 = scmp.eq.s32.totalorder %s29, 0
      %p63 = por %p61, %p62
      %s64 = ssub.s32 %s30, %s42
      %p65 = scmp.eq.s32.totalorder %s64, 0
      %s67 = sadd.s32 %s66, 1
      %s68 = scalar_select %p65, %s66, %s67
      %p71 = pneg %p65
      %p72 = scmp.eq.s32.totalorder %s23, 5
      %p73 = por %p71, %p72
      %p74 = scmp.ne.s32.totalorder %s66, %s69
      %p75 = scmp.eq.s32.totalorder %s23, 0
      %p76 = por %p74, %p75
      %p77 = scmp.ne.s32.totalorder %s66, %s69
      %p78 = scmp.eq.s32.totalorder %s28, 5
      %p79 = por %p77, %p78
      %p80 = scmp.ne.s32.totalorder %s69, %s70
      %p81 = scmp.eq.s32.totalorder %s28, 0
      %p82 = por %p80, %p81
      %p83 = scmp.ne.s32.totalorder %s69, %s70
      %p84 = scmp.eq.s32.totalorder %s29, 5
      %p85 = por %p83, %p84
      %p87 = scmp.ne.s32.totalorder %s70, %s86
      %p88 = scmp.eq.s32.totalorder %s29, 0
      %p89 = por %p87, %p88
      %s90 = ssub.s32 %s30, %s42
      %p91 = scmp.eq.s32.totalorder %s90, 0
      %s93 = sadd.s32 %s92, 1
      %s94 = scalar_select %p91, %s92, %s93
      %p97 = pneg %p91
      %p98 = scmp.eq.s32.totalorder %s23, 5
      %p99 = por %p97, %p98
      %p100 = scmp.ne.s32.totalorder %s92, %s95
      %p101 = scmp.eq.s32.totalorder %s23, 0
      %p102 = por %p100, %p101
      %p103 = scmp.ne.s32.totalorder %s92, %s95
      %p104 = scmp.eq.s32.totalorder %s28, 5
      %p105 = por %p103, %p104
      %p106 = scmp.ne.s32.totalorder %s95, %s96
      %p107 = scmp.eq.s32.totalorder %s28, 0
      %p108 = por %p106, %p107
      %p109 = scmp.ne.s32.totalorder %s95, %s96
      %p110 = scmp.eq.s32.totalorder %s29, 5
      %p111 = por %p109, %p110
      %p113 = scmp.ne.s32.totalorder %s96, %s112
      %p114 = scmp.eq.s32.totalorder %s29, 0
      %p115 = por %p113, %p114
      %s116 = ssub.s32 %s31, %s38
      %s117 = ssub.s32 %s30, %s42
      %s118 = sor.u32 %s116, %s117
      %p119 = scmp.eq.s32.totalorder %s118, 0
      %s121 = sadd.s32 %s120, 1
      %s122 = scalar_select %p119, %s120, %s121
      %p125 = pneg %p119
      %p126 = scmp.eq.s32.totalorder %s23, 5
      %p127 = por %p125, %p126
      %p128 = scmp.ne.s32.totalorder %s120, %s123
      %p129 = scmp.eq.s32.totalorder %s23, 0
      %p130 = por %p128, %p129
      %p131 = scmp.ne.s32.totalorder %s120, %s123
      %p132 = scmp.eq.s32.totalorder %s28, 5
      %p133 = por %p131, %p132
      %p134 = scmp.ne.s32.totalorder %s123, %s124
      %p135 = scmp.eq.s32.totalorder %s28, 0
      %p136 = por %p134, %p135
      %p137 = scmp.ne.s32.totalorder %s123, %s124
      %p138 = scmp.eq.s32.totalorder %s29, 5
      %p139 = por %p137, %p138
      %p141 = scmp.ne.s32.totalorder %s124, %s140
      %p142 = scmp.eq.s32.totalorder %s29, 0
      %p143 = por %p141, %p142
      %s144 = ssub.s32 %s30, %s42
      %p145 = scmp.eq.s32.totalorder %s144, 0
      %s147 = sadd.s32 %s146, 1
      %s148 = scalar_select %p145, %s146, %s147
      %p151 = pneg %p145
      %p152 = scmp.eq.s32.totalorder %s23, 5
      %p153 = por %p151, %p152
      %p154 = scmp.ne.s32.totalorder %s146, %s149
      %p155 = scmp.eq.s32.totalorder %s23, 0
      %p156 = por %p154, %p155
      %p157 = scmp.ne.s32.totalorder %s146, %s149
      %p158 = scmp.eq.s32.totalorder %s28, 5
      %p159 = por %p157, %p158
      %p160 = scmp.ne.s32.totalorder %s149, %s150
      %p161 = scmp.eq.s32.totalorder %s28, 0
      %p162 = por %p160, %p161
      %p163 = scmp.ne.s32.totalorder %s149, %s150
      %p164 = scmp.eq.s32.totalorder %s29, 5
      %p165 = por %p163, %p164
      %p167 = scmp.ne.s32.totalorder %s150, %s166
      %p168 = scmp.eq.s32.totalorder %s29, 0
      %p169 = por %p167, %p168
      %s170 = ssub.s32 %s30, %s42
      %p171 = scmp.eq.s32.totalorder %s170, 0
      %s173 = sadd.s32 %s172, 1
      %s174 = scalar_select %p171, %s172, %s173
      %p177 = pneg %p171
      %p178 = scmp.eq.s32.totalorder %s23, 5
      %p179 = por %p177, %p178
      %p180 = scmp.ne.s32.totalorder %s172, %s175
      %p181 = scmp.eq.s32.totalorder %s23, 0
      %p182 = por %p180, %p181
      %p183 = scmp.ne.s32.totalorder %s172, %s175
      %p184 = scmp.eq.s32.totalorder %s28, 5
      %p185 = por %p183, %p184
      %p186 = scmp.ne.s32.totalorder %s175, %s176
      %p187 = scmp.eq.s32.totalorder %s28, 0
      %p188 = por %p186, %p187
      %p189 = scmp.ne.s32.totalorder %s175, %s176
      %p190 = scmp.eq.s32.totalorder %s29, 5
      %p191 = por %p189, %p190
      %p193 = scmp.ne.s32.totalorder %s176, %s192
      %p194 = scmp.eq.s32.totalorder %s29, 0
      %p195 = por %p193, %p194
      %s196 = ssub.s32 %s31, %s38
      %s197 = ssub.s32 %s30, %s42
      %s198 = sor.u32 %s196, %s197
      %p199 = scmp.eq.s32.totalorder %s198, 0
      %s201 = sadd.s32 %s200, 1
      %s202 = scalar_select %p199, %s200, %s201
      %p205 = pneg %p199
      %p206 = scmp.eq.s32.totalorder %s23, 5
      %p207 = por %p205, %p206
      %p208 = scmp.ne.s32.totalorder %s200, %s203
      %p209 = scmp.eq.s32.totalorder %s23, 0
      %p210 = por %p208, %p209
      %p211 = scmp.ne.s32.totalorder %s200, %s203
      %p212 = scmp.eq.s32.totalorder %s28, 5
      %p213 = por %p211, %p212
      %p214 = scmp.ne.s32.totalorder %s203, %s204
      %p215 = scmp.eq.s32.totalorder %s28, 0
      %p216 = por %p214, %p215
      %p217 = scmp.ne.s32.totalorder %s203, %s204
      %p218 = scmp.eq.s32.totalorder %s29, 5
      %p219 = por %p217, %p218
      %p221 = scmp.ne.s32.totalorder %s204, %s220
      %p222 = scmp.eq.s32.totalorder %s29, 0
      %p223 = por %p221, %p222
      %s224 = ssub.s32 %s31, %s38
      %s225 = ssub.s32 %s30, %s42
      %s226 = sor.u32 %s224, %s225
      %p227 = scmp.eq.s32.totalorder %s226, 0
      %s229 = sadd.s32 %s228, 1
      %s230 = scalar_select %p227, %s228, %s229
      %p233 = pneg %p227
      %p234 = scmp.eq.s32.totalorder %s23, 5
      %p235 = por %p233, %p234
      %p236 = scmp.ne.s32.totalorder %s228, %s231
      %p237 = scmp.eq.s32.totalorder %s23, 0
      %p238 = por %p236, %p237
      %p239 = scmp.ne.s32.totalorder %s228, %s231
      %p240 = scmp.eq.s32.totalorder %s28, 5
      %p241 = por %p239, %p240
      %p242 = scmp.ne.s32.totalorder %s231, %s232
      %p243 = scmp.eq.s32.totalorder %s28, 0
      %p244 = por %p242, %p243
      %p245 = scmp.ne.s32.totalorder %s231, %s232
      %p246 = scmp.eq.s32.totalorder %s29, 5
      %p247 = por %p245, %p246
      %p249 = scmp.ne.s32.totalorder %s232, %s248
      %p250 = scmp.eq.s32.totalorder %s29, 0
      %p251 = por %p249, %p250
      %p252 = scmp.le.s32.totalorder 1, %s23
      %p253 = scmp.lt.s32.totalorder %s23, 7
      %p254 = pnand %p252, %p253
      %p255 = pneg %p254
      // Predicated region
      $region9: #{tpu_custom_call.1} parent=5 // pred_check
        _
      $region10: #{tpu_custom_call.1} parent=5 // pred_check_branch
        %257 = sbr.rel (%p254) target = $region12
      $region11: #{tpu_custom_call.1} parent=5 // pred_region
        %s258 = ssub.s32 %s23, 1
        // Predicated region
        $region13: #{tpu_custom_call.1} parent=11 // pred_check
          %p259 = pneg %p56
        $region14: #{tpu_custom_call.1} parent=11 // pred_check_branch
          %261 = sbr.rel (%p259) target = $region16
        $region15: #{tpu_custom_call.1} parent=11 // pred_region
          %263 = vsyncadd [#allocation3], 0
          %s265 = sshll.u32 %s0, 4
          %s266 = int_to_ptr.hbm [resolvable:$true] %s265
          %s267 = sshll.u32 [#allocation2], 4
          %s268 = int_to_ptr.vmem [resolvable:$true] %s267
          %270 = dma.hbm_to_vmem [thread:$0]  %s266, 128, %s268, [#allocation3]
        $region16: #{tpu_custom_call.1} parent=11 // pred_fallthru
          _
      $region12: #{tpu_custom_call.1} parent=5 // pred_fallthru
        _
      %p271 = scmp.lt.s32.totalorder %s23, 6
      // Predicated region
      $region17: #{tpu_custom_call.1} parent=5 // pred_check
        %p272 = pneg %p271
      $region18: #{tpu_custom_call.1} parent=5 // pred_check_branch
        %274 = sbr.rel (%p272) target = $region20
      $region19: #{tpu_custom_call.1} parent=5 // pred_region
        // Predicated region
        $region21: #{tpu_custom_call.1} parent=19 // pred_check
          %p275 = pneg %p76
        $region22: #{tpu_custom_call.1} parent=19 // pred_check_branch
          %277 = sbr.rel (%p275) target = $region24
        $region23: #{tpu_custom_call.1} parent=19 // pred_region
          %s278 = sand.u32 %s23, 1
          %s279 = scalar_lea.sflag [#allocation6], %s278
          %s280 = sand.u32 %s66, 1
          %s281 = smul.addr %s280, 256
          %s282 = scalar_lea.vmem [#allocation5], %s281
          %284 = vsyncadd %s279, 0
          %s285 = smul.addr %s30, 8
          %s286 = scalar_lea.hbm %s1, %s285
          %s287 = sshll.u32 %s286, 4
          %s288 = int_to_ptr.hbm [resolvable:$true] %s287
          %s289 = sshll.u32 %s282, 4
          %s290 = int_to_ptr.vmem [resolvable:$true] %s289
          %295 = dma.hbm_to_vmem [thread:$0]  %s288, 4096, %s290, %s279, 256, 128, 8
        $region24: #{tpu_custom_call.1} parent=19 // pred_fallthru
          _
        // Predicated region
        $region25: #{tpu_custom_call.1} parent=19 // pred_check
          %p296 = pneg %p102
        $region26: #{tpu_custom_call.1} parent=19 // pred_check_branch
          %298 = sbr.rel (%p296) target = $region28
        $region27: #{tpu_custom_call.1} parent=19 // pred_region
          %s299 = sand.u32 %s23, 1
          %s300 = scalar_lea.sflag [#allocation6], %s299
          %s301 = sand.u32 %s92, 1
          %s302 = smul.addr %s301, 256
          %s303 = scalar_lea.vmem [#allocation7], %s302
          %305 = vsyncadd %s300, 0
          %s306 = smul.addr %s30, 8
          %s307 = scalar_lea.hbm %s2, %s306
          %s308 = sshll.u32 %s307, 4
          %s309 = int_to_ptr.hbm [resolvable:$true] %s308
          %s310 = sshll.u32 %s303, 4
          %s311 = int_to_ptr.vmem [resolvable:$true] %s310
          %316 = dma.hbm_to_vmem [thread:$0]  %s309, 4096, %s311, %s300, 256, 128, 8
        $region28: #{tpu_custom_call.1} parent=19 // pred_fallthru
          _
        // Predicated region
        $region29: #{tpu_custom_call.1} parent=19 // pred_check
          %p317 = pneg %p130
        $region30: #{tpu_custom_call.1} parent=19 // pred_check_branch
          %319 = sbr.rel (%p317) target = $region32
        $region31: #{tpu_custom_call.1} parent=19 // pred_region
          %s320 = sand.u32 %s23, 1
          %s321 = scalar_lea.sflag [#allocation9], %s320
          %s322 = sand.u32 %s120, 1
          %s323 = smul.addr %s322, 128
          %s324 = scalar_lea.vmem [#allocation8], %s323
          %326 = vsyncadd %s321, 0
          %s327 = smul.addr %s31, 64
          %s328 = sadd.s32 %s30, %s327
          %s329 = smul.addr %s328, 4
          %s330 = scalar_lea.hbm %s3, %s329
          %s331 = sshll.u32 %s330, 4
          %s332 = int_to_ptr.hbm [resolvable:$true] %s331
          %s333 = sshll.u32 %s324, 4
          %s334 = int_to_ptr.vmem [resolvable:$true] %s333
          %339 = dma.hbm_to_vmem [thread:$0]  %s332, 2048, %s334, %s321, 128, 64, 4
        $region32: #{tpu_custom_call.1} parent=19 // pred_fallthru
          _
        // Predicated region
        $region33: #{tpu_custom_call.1} parent=19 // pred_check
          %p340 = pneg %p156
        $region34: #{tpu_custom_call.1} parent=19 // pred_check_branch
          %342 = sbr.rel (%p340) target = $region36
        $region35: #{tpu_custom_call.1} parent=19 // pred_region
          %p343 = scmp.lt.s32.totalorder %s30, 1
          %s344 = scalar_select %p343, %s30, 1
          %s345 = scalar_lea.vmem %s4, %s344
        $region36: #{tpu_custom_call.1} parent=19 // pred_fallthru
          _
        // Predicated region
        $region37: #{tpu_custom_call.1} parent=19 // pred_check
          %p346 = pneg %p182
        $region38: #{tpu_custom_call.1} parent=19 // pred_check_branch
          %348 = sbr.rel (%p346) target = $region40
        $region39: #{tpu_custom_call.1} parent=19 // pred_region
          %p349 = scmp.lt.s32.totalorder %s30, 1
          %s350 = scalar_select %p349, %s30, 1
          %s351 = scalar_lea.vmem %s5, %s350
        $region40: #{tpu_custom_call.1} parent=19 // pred_fallthru
          _
        // Predicated region
        $region41: #{tpu_custom_call.1} parent=19 // pred_check
          %p352 = pneg %p210
        $region42: #{tpu_custom_call.1} parent=19 // pred_check_branch
          %354 = sbr.rel (%p352) target = $region44
        $region43: #{tpu_custom_call.1} parent=19 // pred_region
          %s355 = sand.u32 %s23, 1
          %s356 = scalar_lea.sflag [#allocation9], %s355
          %s357 = sand.u32 %s200, 1
          %s358 = scalar_lea.vmem [#allocation10], %s357
          %360 = vsyncadd %s356, 0
          %s361 = smul.addr %s31, 2
          %s362 = sadd.s32 %s30, %s361
          %s363 = scalar_lea.hbm %s6, %s362
          %s365 = sshll.u32 %s363, 4
          %s366 = int_to_ptr.hbm [resolvable:$true] %s365
          %s367 = sshll.u32 %s358, 4
          %s368 = int_to_ptr.vmem [resolvable:$true] %s367
          %370 = dma.hbm_to_vmem [thread:$0]  %s366, 16, %s368, %s356
        $region44: #{tpu_custom_call.1} parent=19 // pred_fallthru
          _
      $region20: #{tpu_custom_call.1} parent=5 // pred_fallthru
        _
      %p371 = scmp.le.s32.totalorder 1, %s23
      %p372 = scmp.lt.s32.totalorder %s23, 7
      %p373 = pnand %p371, %p372
      %p374 = pneg %p373
      // Predicated region
      $region45: #{tpu_custom_call.1} parent=5 // pred_check
        _
      $region46: #{tpu_custom_call.1} parent=5 // pred_check_branch
        %376 = sbr.rel (%p373) target = $region48
      $region47: #{tpu_custom_call.1} parent=5 // pred_region
        %s377 = ssub.s32 %s23, 1
        // Predicated region
        $region49: #{tpu_custom_call.1} parent=47 // pred_check
          %p378 = pneg %p56
        $region50: #{tpu_custom_call.1} parent=47 // pred_check_branch
          %380 = sbr.rel (%p378) target = $region52
        $region51: #{tpu_custom_call.1} parent=47 // pred_region
          %382 = dma.done [#allocation3], 128
        $region52: #{tpu_custom_call.1} parent=47 // pred_fallthru
          _
        %s383 = sand.u32 %s28, 1
        %s384 = scalar_lea.sflag [#allocation6], %s383
        %s385 = sand.u32 %s69, 1
        %s386 = smul.addr %s385, 256
        %s387 = scalar_lea.vmem [#allocation5], %s386
        // Predicated region
        $region53: #{tpu_custom_call.1} parent=47 // pred_check
          %p388 = pneg %p82
        $region54: #{tpu_custom_call.1} parent=47 // pred_check_branch
          %390 = sbr.rel (%p388) target = $region56
        $region55: #{tpu_custom_call.1} parent=47 // pred_region
          %392 = dma.done %s384, 4096
        $region56: #{tpu_custom_call.1} parent=47 // pred_fallthru
          _
        %s393 = sand.u32 %s28, 1
        %s394 = scalar_lea.sflag [#allocation6], %s393
        %s395 = sand.u32 %s95, 1
        %s396 = smul.addr %s395, 256
        %s397 = scalar_lea.vmem [#allocation7], %s396
        // Predicated region
        $region57: #{tpu_custom_call.1} parent=47 // pred_check
          %p398 = pneg %p108
        $region58: #{tpu_custom_call.1} parent=47 // pred_check_branch
          %400 = sbr.rel (%p398) target = $region60
        $region59: #{tpu_custom_call.1} parent=47 // pred_region
          %402 = dma.done %s394, 4096
        $region60: #{tpu_custom_call.1} parent=47 // pred_fallthru
          _
        %s403 = sand.u32 %s28, 1
        %s404 = scalar_lea.sflag [#allocation9], %s403
        %s405 = sand.u32 %s123, 1
        %s406 = smul.addr %s405, 128
        %s407 = scalar_lea.vmem [#allocation8], %s406
        // Predicated region
        $region61: #{tpu_custom_call.1} parent=47 // pred_check
          %p408 = pneg %p136
        $region62: #{tpu_custom_call.1} parent=47 // pred_check_branch
          %410 = sbr.rel (%p408) target = $region64
        $region63: #{tpu_custom_call.1} parent=47 // pred_region
          %412 = dma.done %s404, 2048
        $region64: #{tpu_custom_call.1} parent=47 // pred_fallthru
          _
        %s413 = sand.u32 %s28, 1
        %s414 = scalar_lea.sflag [#allocation9], %s413
        %s415 = sand.u32 %s203, 1
        %s416 = scalar_lea.vmem [#allocation10], %s415
        // Predicated region
        $region65: #{tpu_custom_call.1} parent=47 // pred_check
          %p417 = pneg %p216
        $region66: #{tpu_custom_call.1} parent=47 // pred_check_branch
          %419 = sbr.rel (%p417) target = $region68
        $region67: #{tpu_custom_call.1} parent=47 // pred_region
          %421 = dma.done %s414, 16
        $region68: #{tpu_custom_call.1} parent=47 // pred_fallthru
          _
        %p422 = pneg %p56
        %p423 = pneg %p53
        %s424 = sand.u32 %s28, 1
        %s425 = scalar_lea.sflag [#allocation6], %s424
        %s426 = sand.u32 %s69, 1
        %s427 = smul.addr %s426, 256
        %s428 = scalar_lea.vmem [#allocation5], %s427
        %p429 = pneg %p82
        %p430 = pneg %p79
        %s431 = sand.u32 %s28, 1
        %s432 = scalar_lea.sflag [#allocation6], %s431
        %s433 = sand.u32 %s95, 1
        %s434 = smul.addr %s433, 256
        %s435 = scalar_lea.vmem [#allocation7], %s434
        %p436 = pneg %p108
        %p437 = pneg %p105
        %s438 = sand.u32 %s28, 1
        %s439 = scalar_lea.sflag [#allocation9], %s438
        %s440 = sand.u32 %s123, 1
        %s441 = smul.addr %s440, 128
        %s442 = scalar_lea.vmem [#allocation8], %s441
        %p443 = pneg %p136
        %p444 = pneg %p133
        %p445 = scmp.lt.s32.totalorder %s32, 1
        %s446 = scalar_select %p445, %s32, 1
        %s447 = scalar_lea.vmem %s4, %s446
        %p448 = pneg %p162
        %p449 = pneg %p159
        %p450 = scmp.lt.s32.totalorder %s32, 1
        %s451 = scalar_select %p450, %s32, 1
        %s452 = scalar_lea.vmem %s5, %s451
        %p453 = pneg %p188
        %p454 = pneg %p185
        %s455 = sand.u32 %s28, 1
        %s456 = scalar_lea.sflag [#allocation9], %s455
        %s457 = sand.u32 %s203, 1
        %s458 = scalar_lea.vmem [#allocation10], %s457
        %p459 = pneg %p216
        %p460 = pneg %p213
        %p461 = pneg %p244
        %p462 = pneg %p241
        %s463 = sand.u32 %s231, 1
        %s464 = scalar_lea.sflag [#allocation4], %s463
        %s465 = sand.u32 %s231, 1
        %s466 = smul.addr %s465, 8
        %s467 = scalar_lea.vmem [#allocation11], %s466
        %p468 = scmp.lt.s32.totalorder %s32, 1
        %s469 = scalar_select %p468, %s32, 1
        %s470 = scalar_lea.vmem %s4, %s469
        %p471 = scmp.lt.s32.totalorder %s32, 1
        %s472 = scalar_select %p471, %s32, 1
        %s473 = scalar_lea.vmem %s5, %s472
        %v474 = vld [vmem:[%s387] sm:$0xff]
        %v475 = vld [vmem:[%s387 + $0x8] sm:$0xff]
        %v476 = vld [vmem:[%s387 + $0x10] sm:$0xff]
        %v477 = vld [vmem:[%s387 + $0x18] sm:$0xff]
        %v478 = vld [vmem:[%s387 + $0x20] sm:$0xff]
        %v479 = vld [vmem:[%s387 + $0x28] sm:$0xff]
        %v480 = vld [vmem:[%s387 + $0x30] sm:$0xff]
        %v481 = vld [vmem:[%s387 + $0x38] sm:$0xff]
        %v482 = vld [vmem:[%s387 + $0x40] sm:$0xff]
        %v483 = vld [vmem:[%s387 + $0x48] sm:$0xff]
        %v484 = vld [vmem:[%s387 + $0x50] sm:$0xff]
        %v485 = vld [vmem:[%s387 + $0x58] sm:$0xff]
        %v486 = vld [vmem:[%s387 + $0x60] sm:$0xff]
        %v487 = vld [vmem:[%s387 + $0x68] sm:$0xff]
        %v488 = vld [vmem:[%s387 + $0x70] sm:$0xff]
        %v489 = vld [vmem:[%s387 + $0x78] sm:$0xff]
        %v490 = vld [vmem:[%s387 + $0x80] sm:$0xff]
        %v491 = vld [vmem:[%s387 + $0x88] sm:$0xff]
        %v492 = vld [vmem:[%s387 + $0x90] sm:$0xff]
        %v493 = vld [vmem:[%s387 + $0x98] sm:$0xff]
        %v494 = vld [vmem:[%s387 + $0xa0] sm:$0xff]
        %v495 = vld [vmem:[%s387 + $0xa8] sm:$0xff]
        %v496 = vld [vmem:[%s387 + $0xb0] sm:$0xff]
        %v497 = vld [vmem:[%s387 + $0xb8] sm:$0xff]
        %v498 = vld [vmem:[%s387 + $0xc0] sm:$0xff]
        %v499 = vld [vmem:[%s387 + $0xc8] sm:$0xff]
        %v500 = vld [vmem:[%s387 + $0xd0] sm:$0xff]
        %v501 = vld [vmem:[%s387 + $0xd8] sm:$0xff]
        %v502 = vld [vmem:[%s387 + $0xe0] sm:$0xff]
        %v503 = vld [vmem:[%s387 + $0xe8] sm:$0xff]
        %v504 = vld [vmem:[%s387 + $0xf0] sm:$0xff]
        %v505 = vld [vmem:[%s387 + $0xf8] sm:$0xff]
        %v506 = vld [vmem:[%s397] sm:$0xff]
        %v507 = vld [vmem:[%s397 + $0x8] sm:$0xff]
        %v508 = vld [vmem:[%s397 + $0x10] sm:$0xff]
        %v509 = vld [vmem:[%s397 + $0x18] sm:$0xff]
        %v510 = vld [vmem:[%s397 + $0x20] sm:$0xff]
        %v511 = vld [vmem:[%s397 + $0x28] sm:$0xff]
        %v512 = vld [vmem:[%s397 + $0x30] sm:$0xff]
        %v513 = vld [vmem:[%s397 + $0x38] sm:$0xff]
        %v514 = vld [vmem:[%s397 + $0x40] sm:$0xff]
        %v515 = vld [vmem:[%s397 + $0x48] sm:$0xff]
        %v516 = vld [vmem:[%s397 + $0x50] sm:$0xff]
        %v517 = vld [vmem:[%s397 + $0x58] sm:$0xff]
        %v518 = vld [vmem:[%s397 + $0x60] sm:$0xff]
        %v519 = vld [vmem:[%s397 + $0x68] sm:$0xff]
        %v520 = vld [vmem:[%s397 + $0x70] sm:$0xff]
        %v521 = vld [vmem:[%s397 + $0x78] sm:$0xff]
        %v522 = vld [vmem:[%s397 + $0x80] sm:$0xff]
        %v523 = vld [vmem:[%s397 + $0x88] sm:$0xff]
        %v524 = vld [vmem:[%s397 + $0x90] sm:$0xff]
        %v525 = vld [vmem:[%s397 + $0x98] sm:$0xff]
        %v526 = vld [vmem:[%s397 + $0xa0] sm:$0xff]
        %v527 = vld [vmem:[%s397 + $0xa8] sm:$0xff]
        %v528 = vld [vmem:[%s397 + $0xb0] sm:$0xff]
        %v529 = vld [vmem:[%s397 + $0xb8] sm:$0xff]
        %v530 = vld [vmem:[%s397 + $0xc0] sm:$0xff]
        %v531 = vld [vmem:[%s397 + $0xc8] sm:$0xff]
        %v532 = vld [vmem:[%s397 + $0xd0] sm:$0xff]
        %v533 = vld [vmem:[%s397 + $0xd8] sm:$0xff]
        %v534 = vld [vmem:[%s397 + $0xe0] sm:$0xff]
        %v535 = vld [vmem:[%s397 + $0xe8] sm:$0xff]
        %v536 = vld [vmem:[%s397 + $0xf0] sm:$0xff]
        %v537 = vld [vmem:[%s397 + $0xf8] sm:$0xff]
        %v538 = vld [vmem:[%s407] sm:$0xf]
        %v539 = vld [vmem:[%s407 + $0x4] sm:$0xf]
        %v540 = vld [vmem:[%s407 + $0x8] sm:$0xf]
        %v541 = vld [vmem:[%s407 + $0xc] sm:$0xf]
        %v542 = vld [vmem:[%s407 + $0x10] sm:$0xf]
        %v543 = vld [vmem:[%s407 + $0x14] sm:$0xf]
        %v544 = vld [vmem:[%s407 + $0x18] sm:$0xf]
        %v545 = vld [vmem:[%s407 + $0x1c] sm:$0xf]
        %v546 = vld [vmem:[%s407 + $0x20] sm:$0xf]
        %v547 = vld [vmem:[%s407 + $0x24] sm:$0xf]
        %v548 = vld [vmem:[%s407 + $0x28] sm:$0xf]
        %v549 = vld [vmem:[%s407 + $0x2c] sm:$0xf]
        %v550 = vld [vmem:[%s407 + $0x30] sm:$0xf]
        %v551 = vld [vmem:[%s407 + $0x34] sm:$0xf]
        %v552 = vld [vmem:[%s407 + $0x38] sm:$0xf]
        %v553 = vld [vmem:[%s407 + $0x3c] sm:$0xf]
        %v554 = vld [vmem:[%s407 + $0x40] sm:$0xf]
        %v555 = vld [vmem:[%s407 + $0x44] sm:$0xf]
        %v556 = vld [vmem:[%s407 + $0x48] sm:$0xf]
        %v557 = vld [vmem:[%s407 + $0x4c] sm:$0xf]
        %v558 = vld [vmem:[%s407 + $0x50] sm:$0xf]
        %v559 = vld [vmem:[%s407 + $0x54] sm:$0xf]
        %v560 = vld [vmem:[%s407 + $0x58] sm:$0xf]
        %v561 = vld [vmem:[%s407 + $0x5c] sm:$0xf]
        %v562 = vld [vmem:[%s407 + $0x60] sm:$0xf]
        %v563 = vld [vmem:[%s407 + $0x64] sm:$0xf]
        %v564 = vld [vmem:[%s407 + $0x68] sm:$0xf]
        %v565 = vld [vmem:[%s407 + $0x6c] sm:$0xf]
        %v566 = vld [vmem:[%s407 + $0x70] sm:$0xf]
        %v567 = vld [vmem:[%s407 + $0x74] sm:$0xf]
        %v568 = vld [vmem:[%s407 + $0x78] sm:$0xf]
        %v569 = vld [vmem:[%s407 + $0x7c] sm:$0xf]
        %v570 = vunpack.c.l.bf16 %v538
        %v571 = vunpack.c.l.bf16 %v539
        %v572 = vunpack.c.l.bf16 %v540
        %v573 = vunpack.c.l.bf16 %v541
        %v574 = vunpack.c.l.bf16 %v542
        %v575 = vunpack.c.l.bf16 %v543
        %v576 = vunpack.c.l.bf16 %v544
        %v577 = vunpack.c.l.bf16 %v545
        %v578 = vunpack.c.l.bf16 %v546
        %v579 = vunpack.c.l.bf16 %v547
        %v580 = vunpack.c.l.bf16 %v548
        %v581 = vunpack.c.l.bf16 %v549
        %v582 = vunpack.c.l.bf16 %v550
        %v583 = vunpack.c.l.bf16 %v551
        %v584 = vunpack.c.l.bf16 %v552
        %v585 = vunpack.c.l.bf16 %v553
        %v586 = vunpack.c.l.bf16 %v554
        %v587 = vunpack.c.l.bf16 %v555
        %v588 = vunpack.c.l.bf16 %v556
        %v589 = vunpack.c.l.bf16 %v557
        %v590 = vunpack.c.l.bf16 %v558
        %v591 = vunpack.c.l.bf16 %v559
        %v592 = vunpack.c.l.bf16 %v560
        %v593 = vunpack.c.l.bf16 %v561
        %v594 = vunpack.c.l.bf16 %v562
        %v595 = vunpack.c.l.bf16 %v563
        %v596 = vunpack.c.l.bf16 %v564
        %v597 = vunpack.c.l.bf16 %v565
        %v598 = vunpack.c.l.bf16 %v566
        %v599 = vunpack.c.l.bf16 %v567
        %v600 = vunpack.c.l.bf16 %v568
        %v601 = vunpack.c.l.bf16 %v569
        %v602 = vmul.f32 %v506, %v570
        %v603 = vmul.f32 %v507, %v571
        %v604 = vmul.f32 %v508, %v572
        %v605 = vmul.f32 %v509, %v573
        %v606 = vmul.f32 %v510, %v574
        %v607 = vmul.f32 %v511, %v575
        %v608 = vmul.f32 %v512, %v576
        %v609 = vmul.f32 %v513, %v577
        %v610 = vmul.f32 %v514, %v578
        %v611 = vmul.f32 %v515, %v579
        %v612 = vmul.f32 %v516, %v580
        %v613 = vmul.f32 %v517, %v581
        %v614 = vmul.f32 %v518, %v582
        %v615 = vmul.f32 %v519, %v583
        %v616 = vmul.f32 %v520, %v584
        %v617 = vmul.f32 %v521, %v585
        %v618 = vmul.f32 %v522, %v586
        %v619 = vmul.f32 %v523, %v587
        %v620 = vmul.f32 %v524, %v588
        %v621 = vmul.f32 %v525, %v589
        %v622 = vmul.f32 %v526, %v590
        %v623 = vmul.f32 %v527, %v591
        %v624 = vmul.f32 %v528, %v592
        %v625 = vmul.f32 %v529, %v593
        %v626 = vmul.f32 %v530, %v594
        %v627 = vmul.f32 %v531, %v595
        %v628 = vmul.f32 %v532, %v596
        %v629 = vmul.f32 %v533, %v597
        %v630 = vmul.f32 %v534, %v598
        %v631 = vmul.f32 %v535, %v599
        %v632 = vmul.f32 %v536, %v600
        %v633 = vmul.f32 %v537, %v601
        %v634 = vadd.f32 %v474, %v602
        %v635 = vadd.f32 %v475, %v603
        %v636 = vadd.f32 %v476, %v604
        %v637 = vadd.f32 %v477, %v605
        %v638 = vadd.f32 %v478, %v606
        %v639 = vadd.f32 %v479, %v607
        %v640 = vadd.f32 %v480, %v608
        %v641 = vadd.f32 %v481, %v609
        %v642 = vadd.f32 %v482, %v610
        %v643 = vadd.f32 %v483, %v611
        %v644 = vadd.f32 %v484, %v612
        %v645 = vadd.f32 %v485, %v613
        %v646 = vadd.f32 %v486, %v614
        %v647 = vadd.f32 %v487, %v615
        %v648 = vadd.f32 %v488, %v616
        %v649 = vadd.f32 %v489, %v617
        %v650 = vadd.f32 %v490, %v618
        %v651 = vadd.f32 %v491, %v619
        %v652 = vadd.f32 %v492, %v620
        %v653 = vadd.f32 %v493, %v621
        %v654 = vadd.f32 %v494, %v622
        %v655 = vadd.f32 %v495, %v623
        %v656 = vadd.f32 %v496, %v624
        %v657 = vadd.f32 %v497, %v625
        %v658 = vadd.f32 %v498, %v626
        %v659 = vadd.f32 %v499, %v627
        %v660 = vadd.f32 %v500, %v628
        %v661 = vadd.f32 %v501, %v629
        %v662 = vadd.f32 %v502, %v630
        %v663 = vadd.f32 %v503, %v631
        %v664 = vadd.f32 %v504, %v632
        %v665 = vadd.f32 %v505, %v633
        %v666 = vld [vmem:[%s470] sm:$0x1]
        %v667 = vld [vmem:[%s473] sm:$0x1]
        %v668 = vld [vmem:[%s416] sm:$0x1]
        %v669 = vmul.f32 %v667, %v668
        %v670 = vadd.f32 %v666, %v669
        %v671 = vld [vmem:[#allocation2] sm:$0xff]
        %v672 = vpack.c.bf16 %v635, %v634
        %v673 = vpack.c.bf16 %v637, %v636
        %v674 = vpack.c.bf16 %v639, %v638
        %v675 = vpack.c.bf16 %v641, %v640
        %v676 = vpack.c.bf16 %v643, %v642
        %v677 = vpack.c.bf16 %v645, %v644
        %v678 = vpack.c.bf16 %v647, %v646
        %v679 = vpack.c.bf16 %v649, %v648
        %v680 = vpack.c.bf16 %v651, %v650
        %v681 = vpack.c.bf16 %v653, %v652
        %v682 = vpack.c.bf16 %v655, %v654
        %v683 = vpack.c.bf16 %v657, %v656
        %v684 = vpack.c.bf16 %v659, %v658
        %v685 = vpack.c.bf16 %v661, %v660
        %v686 = vpack.c.bf16 %v663, %v662
        %v687 = vpack.c.bf16 %v665, %v664
        %v689 = vperm.slane %v670, 0
        %v692 = vunpack.c.l.b16 %v671
        %v693 = vunpack.c.h.b16 %v671
        %v694 = vpack.c.b16 %v692, %v692
        %v695 = vpack.c.b16 %v693, %v693
        %698 = vmatpush.bf16.msra.mxu0 %v679
        %699 = vmatpush.bf16.msra.mxu0 %v678
        %700 = vmatpush.bf16.msra.mxu0 %v677
        %701 = vmatpush.bf16.msra.mxu0 %v676
        %702 = vmatpush.bf16.msra.mxu0 %v675
        %703 = vmatpush.bf16.msra.mxu0 %v674
        %704 = vmatpush.bf16.msra.mxu0 %v673
        %705 = vmatpush.bf16.msra.mxu0 %v672
        %706 = vmatmul.bf16.gmra.mxu0 %v694
        %v707 = vpop.f32.mrf.mxu0
        %v708 = vadd.f32 %v689, %v707
        %v709 = vpop.f32.mrf.mxu0
        %710 = vdwg.mxu0
        %711 = vmatpush.bf16.msra.mxu0 %v687
        %712 = vmatpush.bf16.msra.mxu0 %v686
        %713 = vmatpush.bf16.msra.mxu0 %v685
        %714 = vmatpush.bf16.msra.mxu0 %v684
        %715 = vmatpush.bf16.msra.mxu0 %v683
        %716 = vmatpush.bf16.msra.mxu0 %v682
        %717 = vmatpush.bf16.msra.mxu0 %v681
        %718 = vmatpush.bf16.msra.mxu0 %v680
        %719 = vmatmul.bf16.gmra.mxu0 %v695
        %v720 = vpop.f32.mrf.mxu0
        %v721 = vadd.f32 %v708, %v720
        %v722 = vpop.f32.mrf.mxu0
        %723 = vdwg.mxu0
        %724 = vst [vmem:[%s467] sm:$0xff] %v721
        %s725 = sand.u32 %s231, 1
        %s726 = scalar_lea.sflag [#allocation4], %s725
        %s727 = sand.u32 %s231, 1
        %s728 = smul.addr %s727, 8
        %s729 = scalar_lea.vmem [#allocation11], %s728
        // Predicated region
        $region69: #{tpu_custom_call.1} parent=47 // pred_check
          %p730 = pneg %p241
        $region70: #{tpu_custom_call.1} parent=47 // pred_check_branch
          %732 = sbr.rel (%p730) target = $region72
        $region71: #{tpu_custom_call.1} parent=47 // pred_region
          %734 = vsyncadd %s726, 0
          %s735 = smul.addr %s33, 2
          %s736 = sadd.s32 %s32, %s735
          %s737 = smul.addr %s736, 8
          %s738 = scalar_lea.hbm %s7, %s737
          %s740 = sshll.u32 %s729, 4
          %s741 = int_to_ptr.vmem [resolvable:$true] %s740
          %s742 = sshll.u32 %s738, 4
          %s743 = int_to_ptr.hbm [resolvable:$true] %s742
          %745 = dma.vmem_to_hbm [thread:$0]  %s741, 128, %s743, %s726
        $region72: #{tpu_custom_call.1} parent=47 // pred_fallthru
          _
      $region48: #{tpu_custom_call.1} parent=5 // pred_fallthru
        _
      %p746 = scmp.le.s32.totalorder 2, %s23
      // Predicated region
      $region73: #{tpu_custom_call.1} parent=5 // pred_check
        %p747 = pneg %p746
      $region74: #{tpu_custom_call.1} parent=5 // pred_check_branch
        %749 = sbr.rel (%p747) target = $region76
      $region75: #{tpu_custom_call.1} parent=5 // pred_region
        %s750 = ssub.s32 %s23, 2
        // Predicated region
        $region77: #{tpu_custom_call.1} parent=75 // pred_check
          %p751 = pneg %p247
        $region78: #{tpu_custom_call.1} parent=75 // pred_check_branch
          %753 = sbr.rel (%p751) target = $region80
        $region79: #{tpu_custom_call.1} parent=75 // pred_region
          %s754 = sand.u32 %s232, 1
          %s755 = scalar_lea.sflag [#allocation4], %s754
          %s756 = sand.u32 %s232, 1
          %s757 = smul.addr %s756, 8
          %s758 = scalar_lea.vmem [#allocation11], %s757
          %760 = dma.done %s755, 128
        $region80: #{tpu_custom_call.1} parent=75 // pred_fallthru
          _
      $region76: #{tpu_custom_call.1} parent=5 // pred_fallthru
        _
    $region6: #{tpu_custom_call.1} parent=1 // loop_footer
      %s27 = sadd.s32 1, %s23
    $region7: #{tpu_custom_call.1} parent=1 // loop_footer_branch
      %22 = sbr.rel target = $region3
    $region8: #{tpu_custom_call.1} parent=1 // loop_exit
      _
    %761 = vsyncpa [#allocation3], 1
    %s762 = scalar_lea.sflag [#allocation3], 1
    %763 = vsyncpa %s762, 1
    %764 = vsyncpa [#allocation6], 1
    %s765 = scalar_lea.sflag [#allocation6], 1
    %766 = vsyncpa %s765, 1
    %767 = vsyncpa [#allocation9], 1
    %s768 = scalar_lea.sflag [#allocation9], 1
    %769 = vsyncpa %s768, 1
    %770 = vsyncpa [#allocation4], 1
    %s771 = scalar_lea.sflag [#allocation4], 1
    %772 = vsyncpa %s771, 1

</llo_original>
